<compile_context>
chip_gen: v7x
topology: tpu7x:2x2x1
jax: 0.10.0
libtpu: 0.0.40
codegen_flags: <defaults>
</compile_context>

<pallas_src>
import functools

import jax
import jax.numpy as jnp
from jax.experimental import pallas as pl
from jax.experimental.pallas import tpu as pltpu


def _diou_loss_kernel(pred_ref, pred_t_ref, tgt_t_ref, loss_ref, max_sc, *, eps):
    """grid = (j: target tiles [parallel], k: pred tiles [arbitrary/reduction])."""
    k = pl.program_id(1)
    nk = pl.num_programs(1)

    # ---- init running max over the pred dimension for this target tile ----
    @pl.when(k == 0)
    def _():
        max_sc[...] = jnp.full_like(max_sc, -jnp.inf)

    pred = pred_ref[...]    # [TILE_P, 4]  pred rows for this k block (sublanes)
    tgt_t = tgt_t_ref[...]  # [4, TILE_T]  target coords for this j block (lanes)

    px1 = pred[:, 0:1]; py1 = pred[:, 1:2]; px2 = pred[:, 2:3]; py2 = pred[:, 3:4]      # [P, 1]
    tx1 = tgt_t[0:1, :]; ty1 = tgt_t[1:2, :]; tx2 = tgt_t[2:3, :]; ty2 = tgt_t[3:4, :]  # [1, T]

    # ---- pairwise IoU tile (torchvision.ops.box_iou semantics, no eps) ----
    ix1 = jnp.maximum(px1, tx1)
    iy1 = jnp.maximum(py1, ty1)
    ix2 = jnp.minimum(px2, tx2)
    iy2 = jnp.minimum(py2, ty2)
    inter = jnp.maximum(ix2 - ix1, 0.0) * jnp.maximum(iy2 - iy1, 0.0)   # [P, T]

    area_p = (px2 - px1) * (py2 - py1)          # [P, 1]
    area_t = (tx2 - tx1) * (ty2 - ty1)          # [1, T]
    union = area_p + area_t - inter             # [P, T]
    # EUP approx reciprocal instead of a VALU-path divide; 0/0 -> 0*inf -> NaN
    # exactly like the reference's unguarded division.
    iou_tile = inter * pl.reciprocal(union, approx=True)                # [P, T]

    # Reduce within the tile on the XLU (sublane reduce), then a single cheap
    # VPU maximum fold into the [1, TILE_T] running-max scratch.
    max_sc[...] = jnp.maximum(max_sc[...],
                              jnp.max(iou_tile, axis=0, keepdims=True))

    # ---- final k step: O(N) DIoU penalty + lane-dense output write ----
    @pl.when(k == nk - 1)
    def _():
        max_iou = max_sc[...]
        # torch.nan_to_num(nan=0.0) then clamp(min=0)
        max_iou = jnp.maximum(jnp.where(jnp.isnan(max_iou), 0.0, max_iou), 0.0)

        # pred rows aligned with the *target* index j (elementwise pairing).
        pred_t = pred_t_ref[...]                 # [4, TILE_T]
        p_lo = pred_t[0:2, :]; p_hi = pred_t[2:4, :]   # (x1,y1) / (x2,y2) as [2, T]
        t_lo = tgt_t[0:2, :];  t_hi = tgt_t[2:4, :]

        d_center = (p_lo + p_hi) * 0.5 - (t_lo + t_hi) * 0.5                 # [2, T]
        center_dist = jnp.sum(d_center * d_center, axis=0, keepdims=True)    # [1, T]

        e_span = jnp.maximum(p_hi, t_hi) - jnp.minimum(p_lo, t_lo)           # [2, T]
        enclosing_diag = jnp.sum(e_span * e_span, axis=0, keepdims=True)

        # Exact divide here: cold path (runs once per target tile, [1, T] elems),
        # keeps the returned loss free of the approx-reciprocal error.
        diou = max_iou - center_dist / (enclosing_diag + eps)
        loss_ref[...] = 1.0 - diou                                            # [1, TILE_T]


def _round_up(x, m):
    return ((x + m - 1) // m) * m


def diou_loss(pred_boxes, target_boxes, *, tile_p=1024, tile_t=1024, eps=1e-7):
    """Pallas implementation of DIoULoss.forward. Accepts [..., 4] boxes,
    returns per-box losses shaped like the input's leading dims."""
    pred_in = jnp.asarray(pred_boxes, jnp.float32)
    tgt_in = jnp.asarray(target_boxes, jnp.float32)
    lead_shape = pred_in.shape[:-1]
    pred = pred_in.reshape(-1, 4)
    tgt = tgt_in.reshape(-1, 4)
    n = pred.shape[0]

    # --- lane axis (targets): 128-granular; aim for >=2 j tiles so the
    # "parallel" axis can shard across v7x's 2 TensorCores (no-op on v5e/v6e).
    n128 = _round_up(n, 128)
    tile_t = _round_up(min(tile_t, n128), 128)
    if n128 // tile_t < 2 and n128 >= 256:
        tile_t = _round_up((n128 + 1) // 2, 128)
    n_t = _round_up(n, tile_t)   # padded target count (lane axis)

    # --- sublane axis (pred reduction): 8-granular, large tile to amortize the
    # ~0.35 us/grid-step pipeline overhead (keep <= 1024 for v7x's 64 MiB VMEM).
    tile_p = _round_up(min(tile_p, _round_up(n, 8)), 8)
    n_p = _round_up(n, tile_p)   # padded pred count (sublane axis)

    # Host-side zero-box padding: provably cannot change
    # clamp(nan_to_num(max_iou), min=0), and padded target columns are sliced off.
    pred_rows = jnp.zeros((n_p, 4), jnp.float32).at[:n, :].set(pred)     # k-axis view
    pred_cols = jnp.zeros((4, n_t), jnp.float32).at[:, :n].set(pred.T)   # j-axis view (penalty)
    tgt_cols = jnp.zeros((4, n_t), jnp.float32).at[:, :n].set(tgt.T)     # j-axis view

    grid = (n_t // tile_t, n_p // tile_p)   # (parallel target tiles, reduction pred tiles)

    out = pl.pallas_call(
        functools.partial(_diou_loss_kernel, eps=eps),
        out_shape=jax.ShapeDtypeStruct((1, n_t), jnp.float32),
        grid_spec=pltpu.PrefetchScalarGridSpec(
            num_scalar_prefetch=0,
            grid=grid,
            in_specs=[
                # pred rows streamed over the reduction axis k (double-buffered).
                pl.BlockSpec((tile_p, 4), lambda j, k: (k, 0)),
                # pred / target coords for the current target tile j (constant over k).
                pl.BlockSpec((4, tile_t), lambda j, k: (0, j)),
                pl.BlockSpec((4, tile_t), lambda j, k: (0, j)),
            ],
            out_specs=pl.BlockSpec((1, tile_t), lambda j, k: (0, j)),
            scratch_shapes=[pltpu.VMEM((1, tile_t), jnp.float32)],
        ),
        compiler_params=pltpu.CompilerParams(
            dimension_semantics=("parallel", "arbitrary"),
            # ~25-30 MiB live at tile_p=tile_t=1024; 48 MiB leaves headroom on
            # v7x (64 MiB physical) and overrides v5e's 16 MiB scoped default.
            vmem_limit_bytes=48 * 1024 * 1024,
        ),
    )(pred_rows, pred_cols, tgt_cols)

    return out[0, :n].reshape(lead_shape)


def _diou_loss_ref(pred, tgt, eps=1e-7):
    """Plain-JAX reference mirroring the PyTorch DIoULoss.forward."""
    pred = pred.reshape(-1, 4)
    tgt = tgt.reshape(-1, 4)
    p = pred[:, None, :]   # [N,1,4]
    t = tgt[None, :, :]    # [1,N,4]
    ix1 = jnp.maximum(p[..., 0], t[..., 0]); iy1 = jnp.maximum(p[..., 1], t[..., 1])
    ix2 = jnp.minimum(p[..., 2], t[..., 2]); iy2 = jnp.minimum(p[..., 3], t[..., 3])
    inter = jnp.clip(ix2 - ix1, 0) * jnp.clip(iy2 - iy1, 0)
    a1 = (p[..., 2] - p[..., 0]) * (p[..., 3] - p[..., 1])
    a2 = (t[..., 2] - t[..., 0]) * (t[..., 3] - t[..., 1])
    iou_mat = inter / (a1 + a2 - inter)
    max_iou = jnp.max(iou_mat, axis=0)
    max_iou = jnp.maximum(jnp.nan_to_num(max_iou, nan=0.0), 0.0)
    pcx = (pred[:, 0] + pred[:, 2]) / 2; pcy = (pred[:, 1] + pred[:, 3]) / 2
    tcx = (tgt[:, 0] + tgt[:, 2]) / 2; tcy = (tgt[:, 1] + tgt[:, 3]) / 2
    cdist = (pcx - tcx) ** 2 + (pcy - tcy) ** 2
    ex1 = jnp.minimum(pred[:, 0], tgt[:, 0]); ey1 = jnp.minimum(pred[:, 1], tgt[:, 1])
    ex2 = jnp.maximum(pred[:, 2], tgt[:, 2]); ey2 = jnp.maximum(pred[:, 3], tgt[:, 3])
    ediag = (ex2 - ex1) ** 2 + (ey2 - ey1) ** 2
    return 1.0 - (max_iou - cdist / (ediag + eps))


if __name__ == "__main__":
    key = jax.random.PRNGKey(0)

    def make_boxes(k, shape):
        kxy, kwh = jax.random.split(k)
        xy = jax.random.uniform(kxy, shape[:-1] + (2,), jnp.float32, 0.0, 8.0)
        wh = jax.random.uniform(kwh, shape[:-1] + (2,), jnp.float32, 0.5, 4.0)
        return jnp.concatenate([xy, xy + wh], axis=-1)   # well-formed: x1<x2, y1<y2

    # Case 1: small [batch=2, num_boxes=8, 4] single-tile problem (module-shaped).
    # Case 2: non-divisible flat N with small tiles so the padded, multi-j,
    # multi-k (running-max) path and the target-tile split are exercised.
    cases = [((2, 8, 4), {}), ((200, 4), dict(tile_p=64, tile_t=128))]
    for shape, tile_kwargs in cases:
        k1, k2, key = jax.random.split(key, 3)
        pred_boxes = make_boxes(k1, shape)
        target_boxes = make_boxes(k2, shape)

        loss = diou_loss(pred_boxes, target_boxes, **tile_kwargs)
        jax.block_until_ready(loss)

        ref = _diou_loss_ref(pred_boxes, target_boxes).reshape(shape[:-1])
        assert loss.shape == shape[:-1], (loss.shape, shape)
        # Tolerance covers the EUP approx-reciprocal ULP difference on the IoU
        # path (the final penalty divide is exact).
        assert jnp.allclose(loss, ref, atol=5e-3, rtol=5e-3), (shape, loss, ref)

    print("KERNEL_OK")
</pallas_src>

<mosaic_0001>
module attributes {stable_mosaic.version = 11 : i64} {
  func.func @_diou_loss_kernel(%arg0: i32, %arg1: i32, %arg2: memref<16x4xf32, #tpu.memory_space<vmem>>, %arg3: memref<4x128xf32, #tpu.memory_space<vmem>>, %arg4: memref<4x128xf32, #tpu.memory_space<vmem>>, %arg5: memref<1x128xf32, #tpu.memory_space<vmem>>, %arg6: memref<1x128xf32, #tpu.memory_space<vmem>>) attributes {dimension_semantics = [#tpu.dimension_semantics<parallel>, #tpu.dimension_semantics<arbitrary>], iteration_bounds = array<i64: 1, 1>, scalar_prefetch = 0 : i64, scratch_operands = 1 : i64, tpu.core_type = #tpu.core_type<tc>, window_params = [{transform_indices = @transform_0, window_bounds = array<i64: 16, 4>}, {transform_indices = @transform_1, window_bounds = array<i64: 4, 128>}, {transform_indices = @transform_2, window_bounds = array<i64: 4, 128>}, {transform_indices = @transform_3, window_bounds = array<i64: 1, 128>}]} {
    %c0_i32 = arith.constant 0 : i32
    %0 = arith.cmpi eq, %arg1, %c0_i32 : i32
    %1 = arith.extui %0 : i1 to i32
    %c0_i32_0 = arith.constant 0 : i32
    %2 = arith.cmpi ne, %1, %c0_i32_0 : i32
    scf.if %2 {
      %cst_12 = arith.constant 0xFF800000 : f32
      %52 = vector.broadcast %cst_12 : f32 to vector<1x128xf32>
      %c0_13 = arith.constant 0 : index
      %c0_14 = arith.constant 0 : index
      %53 = vector.load %arg6[%c0_13, %c0_14] : memref<1x128xf32, #tpu.memory_space<vmem>>, vector<1x128xf32>
      tpu.vector_store %arg6[%c0_13, %c0_14], %52 {strides = array<i32>} : memref<1x128xf32, #tpu.memory_space<vmem>>, vector<1x128xf32>,
    } else {
    }
    %c0 = arith.constant 0 : index
    %c0_1 = arith.constant 0 : index
    %3 = vector.load %arg2[%c0, %c0_1] : memref<16x4xf32, #tpu.memory_space<vmem>>, vector<16x4xf32>
    %c0_2 = arith.constant 0 : index
    %c0_3 = arith.constant 0 : index
    %4 = vector.load %arg4[%c0_2, %c0_3] : memref<4x128xf32, #tpu.memory_space<vmem>>, vector<4x128xf32>
    %5 = vector.extract_strided_slice %3 {offsets = [0, 0], sizes = [16, 1], strides = [1, 1]} : vector<16x4xf32> to vector<16x1xf32>
    %6 = vector.extract_strided_slice %3 {offsets = [0, 1], sizes = [16, 1], strides = [1, 1]} : vector<16x4xf32> to vector<16x1xf32>
    %7 = vector.extract_strided_slice %3 {offsets = [0, 2], sizes = [16, 1], strides = [1, 1]} : vector<16x4xf32> to vector<16x1xf32>
    %8 = vector.extract_strided_slice %3 {offsets = [0, 3], sizes = [16, 1], strides = [1, 1]} : vector<16x4xf32> to vector<16x1xf32>
    %9 = vector.extract_strided_slice %4 {offsets = [0, 0], sizes = [1, 128], strides = [1, 1]} : vector<4x128xf32> to vector<1x128xf32>
    %10 = vector.extract_strided_slice %4 {offsets = [1, 0], sizes = [1, 128], strides = [1, 1]} : vector<4x128xf32> to vector<1x128xf32>
    %11 = vector.extract_strided_slice %4 {offsets = [2, 0], sizes = [1, 128], strides = [1, 1]} : vector<4x128xf32> to vector<1x128xf32>
    %12 = vector.extract_strided_slice %4 {offsets = [3, 0], sizes = [1, 128], strides = [1, 1]} : vector<4x128xf32> to vector<1x128xf32>
    %13 = vector.broadcast %5 : vector<16x1xf32> to vector<16x128xf32>
    %14 = vector.broadcast %9 : vector<1x128xf32> to vector<16x128xf32>
    %15 = arith.maximumf %13, %14 : vector<16x128xf32>
    %16 = vector.broadcast %6 : vector<16x1xf32> to vector<16x128xf32>
    %17 = vector.broadcast %10 : vector<1x128xf32> to vector<16x128xf32>
    %18 = arith.maximumf %16, %17 : vector<16x128xf32>
    %19 = vector.broadcast %7 : vector<16x1xf32> to vector<16x128xf32>
    %20 = vector.broadcast %11 : vector<1x128xf32> to vector<16x128xf32>
    %21 = arith.minimumf %19, %20 : vector<16x128xf32>
    %22 = vector.broadcast %8 : vector<16x1xf32> to vector<16x128xf32>
    %23 = vector.broadcast %12 : vector<1x128xf32> to vector<16x128xf32>
    %24 = arith.minimumf %22, %23 : vector<16x128xf32>
    %25 = arith.subf %21, %15 : vector<16x128xf32>
    %cst = arith.constant 0.000000e+00 : f32
    %26 = vector.broadcast %cst : f32 to vector<16x128xf32>
    %27 = arith.maximumf %25, %26 : vector<16x128xf32>
    %28 = arith.subf %24, %18 : vector<16x128xf32>
    %cst_4 = arith.constant 0.000000e+00 : f32
    %29 = vector.broadcast %cst_4 : f32 to vector<16x128xf32>
    %30 = arith.maximumf %28, %29 : vector<16x128xf32>
    %31 = arith.mulf %27, %30 : vector<16x128xf32>
    %32 = arith.subf %7, %5 : vector<16x1xf32>
    %33 = arith.subf %8, %6 : vector<16x1xf32>
    %34 = arith.mulf %32, %33 : vector<16x1xf32>
    %35 = arith.subf %11, %9 : vector<1x128xf32>
    %36 = arith.subf %12, %10 : vector<1x128xf32>
    %37 = arith.mulf %35, %36 : vector<1x128xf32>
    %38 = vector.broadcast %34 : vector<16x1xf32> to vector<16x128xf32>
    %39 = vector.broadcast %37 : vector<1x128xf32> to vector<16x128xf32>
    %40 = arith.addf %38, %39 : vector<16x128xf32>
    %41 = arith.subf %40, %31 : vector<16x128xf32>
    %42 = tpu.reciprocal %41 {approx = true} : vector<16x128xf32> -> vector<16x128xf32>
    %43 = arith.mulf %31, %42 : vector<16x128xf32>
    %c0_5 = arith.constant 0 : index
    %c0_6 = arith.constant 0 : index
    %44 = vector.load %arg6[%c0_5, %c0_6] : memref<1x128xf32, #tpu.memory_space<vmem>>, vector<1x128xf32>
    %cst_7 = arith.constant dense<0xFF800000> : vector<128xf32>
    %45 = vector.multi_reduction <maximumf>, %43, %cst_7 [0] : vector<16x128xf32> to vector<128xf32>
    %46 = vector.shape_cast %45 : vector<128xf32> to vector<1x128xf32>
    %47 = arith.maximumf %44, %46 : vector<1x128xf32>
    %c0_8 = arith.constant 0 : index
    %c0_9 = arith.constant 0 : index
    %48 = vector.load %arg6[%c0_8, %c0_9] : memref<1x128xf32, #tpu.memory_space<vmem>>, vector<1x128xf32>
    tpu.vector_store %arg6[%c0_8, %c0_9], %47 {strides = array<i32>} : memref<1x128xf32, #tpu.memory_space<vmem>>, vector<1x128xf32>,
    %c0_i32_10 = arith.constant 0 : i32
    %49 = arith.cmpi eq, %arg1, %c0_i32_10 : i32
    %50 = arith.extui %49 : i1 to i32
    %c0_i32_11 = arith.constant 0 : i32
    %51 = arith.cmpi ne, %50, %c0_i32_11 : i32
    scf.if %51 {
      %c0_12 = arith.constant 0 : index
      %c0_13 = arith.constant 0 : index
      %52 = vector.load %arg6[%c0_12, %c0_13] : memref<1x128xf32, #tpu.memory_space<vmem>>, vector<1x128xf32>
      %53 = arith.cmpf one, %52, %52 : vector<1x128xf32>
      %cst_14 = arith.constant 0.000000e+00 : f32
      %54 = vector.broadcast %cst_14 : f32 to vector<1x128xf32>
      %55 = arith.select %53, %54, %52 : vector<1x128xi1>, vector<1x128xf32>
      %cst_15 = arith.constant 0.000000e+00 : f32
      %56 = vector.broadcast %cst_15 : f32 to vector<1x128xf32>
      %57 = arith.maximumf %55, %56 : vector<1x128xf32>
      %c0_16 = arith.constant 0 : index
      %c0_17 = arith.constant 0 : index
      %58 = vector.load %arg3[%c0_16, %c0_17] : memref<4x128xf32, #tpu.memory_space<vmem>>, vector<4x128xf32>
      %59 = vector.extract_strided_slice %58 {offsets = [0, 0], sizes = [2, 128], strides = [1, 1]} : vector<4x128xf32> to vector<2x128xf32>
      %60 = vector.extract_strided_slice %58 {offsets = [2, 0], sizes = [2, 128], strides = [1, 1]} : vector<4x128xf32> to vector<2x128xf32>
      %61 = vector.extract_strided_slice %4 {offsets = [0, 0], sizes = [2, 128], strides = [1, 1]} : vector<4x128xf32> to vector<2x128xf32>
      %62 = vector.extract_strided_slice %4 {offsets = [2, 0], sizes = [2, 128], strides = [1, 1]} : vector<4x128xf32> to vector<2x128xf32>
      %63 = arith.addf %59, %60 : vector<2x128xf32>
      %cst_18 = arith.constant 5.000000e-01 : f32
      %64 = vector.broadcast %cst_18 : f32 to vector<2x128xf32>
      %65 = arith.mulf %63, %64 : vector<2x128xf32>
      %66 = arith.addf %61, %62 : vector<2x128xf32>
      %cst_19 = arith.constant 5.000000e-01 : f32
      %67 = vector.broadcast %cst_19 : f32 to vector<2x128xf32>
      %68 = arith.mulf %66, %67 : vector<2x128xf32>
      %69 = arith.subf %65, %68 : vector<2x128xf32>
      %70 = arith.mulf %69, %69 : vector<2x128xf32>
      %cst_20 = arith.constant dense<0.000000e+00> : vector<128xf32>
      %71 = vector.multi_reduction <add>, %70, %cst_20 [0] : vector<2x128xf32> to vector<128xf32>
      %72 = vector.shape_cast %71 : vector<128xf32> to vector<1x128xf32>
      %73 = arith.maximumf %60, %62 : vector<2x128xf32>
      %74 = arith.minimumf %59, %61 : vector<2x128xf32>
      %75 = arith.subf %73, %74 : vector<2x128xf32>
      %76 = arith.mulf %75, %75 : vector<2x128xf32>
      %cst_21 = arith.constant dense<0.000000e+00> : vector<128xf32>
      %77 = vector.multi_reduction <add>, %76, %cst_21 [0] : vector<2x128xf32> to vector<128xf32>
      %78 = vector.shape_cast %77 : vector<128xf32> to vector<1x128xf32>
      %cst_22 = arith.constant 1.000000e-07 : f32
      %79 = vector.broadcast %cst_22 : f32 to vector<1x128xf32>
      %80 = arith.addf %78, %79 : vector<1x128xf32>
      %81 = arith.divf %72, %80 : vector<1x128xf32>
      %82 = arith.subf %57, %81 : vector<1x128xf32>
      %cst_23 = arith.constant 1.000000e+00 : f32
      %83 = vector.broadcast %cst_23 : f32 to vector<1x128xf32>
      %84 = arith.subf %83, %82 : vector<1x128xf32>
      %c0_24 = arith.constant 0 : index
      %c0_25 = arith.constant 0 : index
      %85 = vector.load %arg5[%c0_24, %c0_25] : memref<1x128xf32, #tpu.memory_space<vmem>>, vector<1x128xf32>
      tpu.vector_store %arg5[%c0_24, %c0_25], %84 {strides = array<i32>} : memref<1x128xf32, #tpu.memory_space<vmem>>, vector<1x128xf32>,
    } else {
    }
    return
  }
  func.func @transform_0(%arg0: i32, %arg1: i32) -> (i32, i32) {
    %c0_i32 = arith.constant 0 : i32
    %c0_i32_0 = arith.constant 0 : i32
    return %arg1, %c0_i32 : i32, i32
  }
  func.func @transform_1(%arg0: i32, %arg1: i32) -> (i32, i32) {
    %c0_i32 = arith.constant 0 : i32
    %c0_i32_0 = arith.constant 0 : i32
    return %c0_i32, %arg0 : i32, i32
  }
  func.func @transform_2(%arg0: i32, %arg1: i32) -> (i32, i32) {
    %c0_i32 = arith.constant 0 : i32
    %c0_i32_0 = arith.constant 0 : i32
    return %c0_i32, %arg0 : i32, i32
  }
  func.func @transform_3(%arg0: i32, %arg1: i32) -> (i32, i32) {
    %c0_i32 = arith.constant 0 : i32
    %c0_i32_0 = arith.constant 0 : i32
    return %c0_i32, %arg0 : i32, i32
  }
}

</mosaic_0001>

<llo_original>
// kernel: tpu_custom_call.1
$region0: #{tpu_custom_call.1}
  #allocation0 [shape = 'u32[]', space=smem, size = 0x4, offset = 0x4, fixed_abs, tag = 'smem constant byte address 0x4 - core index']
  #allocation1 [shape = 'u32[144,128]{1,0:T(1,128)}', space=vmem, size = 0x12000, scoped, tag = 'internal scratch']
  #allocation2 [shape = 'f32[1,128]{1,0:T(1,128)}', space=vmem, size = 0x200, scoped, tag = 'scratch operand']
  %s0 = inlined_call_operand.vmem [shape: f32[16,4], index: 0, kind: input, shape index: {}]
  %s1 = inlined_call_operand.vmem [shape: f32[4,128], index: 1, kind: input, shape index: {}]
  %s2 = inlined_call_operand.vmem [shape: f32[4,128], index: 2, kind: input, shape index: {}]
  %s3 = inlined_call_operand.hbm [shape: f32[1,128], index: 3, kind: output, shape index: {}]
  %s4 = sld [smem:[#allocation0]]
  $region30: #{tpu_custom_call.1} parent=0
    _
  %s6 = ssub.s32 1, %s4
  %s7 = scalar_select 0, %s6, %s4
  $region1: #{tpu_custom_call.1} parent=0
    #allocation3 [shape = 'u8[512]{0}', space=vmem, size = 0x400, scoped, tag = 'output window, operand 0, single buffered']
    #allocation4 [shape = 's32[1]{0}', space=sflag, size = 0x4, scoped, tag = 'scoped memory for tpu_custom_call.1']
    %8 = vsyncpa [#allocation4], 0
    // Predicated region
    $region2: #{tpu_custom_call.1} parent=1 // pred_check
      _
    $region3: #{tpu_custom_call.1} parent=1 // pred_check_branch
      %10 = sbr.rel (0) target = $region5
    $region4: #{tpu_custom_call.1} parent=1 // pred_region
      _
    $region5: #{tpu_custom_call.1} parent=1 // pred_fallthru
      _
    // Predicated region
    $region6: #{tpu_custom_call.1} parent=1 // pred_check
      _
    $region7: #{tpu_custom_call.1} parent=1 // pred_check_branch
      %12 = sbr.rel (0) target = $region9
    $region8: #{tpu_custom_call.1} parent=1 // pred_region
      _
    $region9: #{tpu_custom_call.1} parent=1 // pred_fallthru
      _
    // Predicated region
    $region10: #{tpu_custom_call.1} parent=1 // pred_check
      _
    $region11: #{tpu_custom_call.1} parent=1 // pred_check_branch
      %14 = sbr.rel (0) target = $region13
    $region12: #{tpu_custom_call.1} parent=1 // pred_region
      _
    $region13: #{tpu_custom_call.1} parent=1 // pred_fallthru
      _
    %p15 = scmp.eq.s32.totalorder 0, 0
    // Predicated region
    $region14: #{tpu_custom_call.1} parent=1 // pred_check
      %p16 = pneg %p15
    $region15: #{tpu_custom_call.1} parent=1 // pred_check_branch
      %18 = sbr.rel (%p16) target = $region17
    $region16: #{tpu_custom_call.1} parent=1 // pred_region
      %19 = vst [vmem:[#allocation2] sm:$0x1] -inf
    $region17: #{tpu_custom_call.1} parent=1 // pred_fallthru
      _
    %v20 = vld [vmem:[%s0] sm:$0xff]
    %v21 = vld [vmem:[%s0 + $0x8] sm:$0xff]
    %v22 = vld [vmem:[%s2] sm:$0xf]
    %24 = vset.pattern.permute.xlu0 0
    %25 = vperm.xlu0 %24, %v20
    %v26 = vpop.permute.xlu0 %25
    %29 = vset.pattern.permute.xlu0 0
    %30 = vperm.xlu0 %29, %v21
    %v31 = vpop.permute.xlu0 %30
    %v33 = vlaneseq
    %v34 = vshrl.u32 %v33, 7
    %v35 = vsub.s32 0, %v34
    %v36 = vrot.slane %v22, %v35
    %v37 = vmax.f32 %v26, %v36
    %v38 = vmax.f32 %v31, %v36
    %39 = vset.pattern.permute.xlu0 1
    %40 = vperm.xlu0 %39, %v20
    %v41 = vpop.permute.xlu0 %40
    %43 = vset.pattern.permute.xlu0 1
    %44 = vperm.xlu0 %43, %v21
    %v45 = vpop.permute.xlu0 %44
    %v47 = vlaneseq
    %v48 = vshrl.u32 %v47, 7
    %v49 = vsub.s32 1, %v48
    %v50 = vrot.slane %v22, %v49
    %v51 = vmax.f32 %v41, %v50
    %v52 = vmax.f32 %v45, %v50
    %53 = vset.pattern.permute.xlu0 2
    %54 = vperm.xlu0 %53, %v20
    %v55 = vpop.permute.xlu0 %54
    %57 = vset.pattern.permute.xlu0 2
    %58 = vperm.xlu0 %57, %v21
    %v59 = vpop.permute.xlu0 %58
    %v61 = vlaneseq
    %v62 = vshrl.u32 %v61, 7
    %v63 = vsub.s32 2, %v62
    %v64 = vrot.slane %v22, %v63
    %v65 = vmin.f32 %v55, %v64
    %v66 = vmin.f32 %v59, %v64
    %67 = vset.pattern.permute.xlu0 3
    %68 = vperm.xlu0 %67, %v20
    %v69 = vpop.permute.xlu0 %68
    %71 = vset.pattern.permute.xlu0 3
    %72 = vperm.xlu0 %71, %v21
    %v73 = vpop.permute.xlu0 %72
    %v75 = vlaneseq
    %v76 = vshrl.u32 %v75, 7
    %v77 = vsub.s32 3, %v76
    %v78 = vrot.slane %v22, %v77
    %v79 = vmin.f32 %v69, %v78
    %v80 = vmin.f32 %v73, %v78
    %v81 = vsub.f32 %v65, %v37
    %v82 = vsub.f32 %v66, %v38
    %v83 = vmax.f32 %v81, 0.0
    %v84 = vmax.f32 %v82, 0.0
    %v85 = vsub.f32 %v79, %v51
    %v86 = vsub.f32 %v80, %v52
    %v87 = vmax.f32 %v85, 0.0
    %v88 = vmax.f32 %v86, 0.0
    %v89 = vmul.f32 %v83, %v87
    %v90 = vmul.f32 %v84, %v88
    %91 = vrot.lane.b32.xlu0 %v20, 2
    %v92 = vpop.permute.xlu0 %91
    %93 = vrot.lane.b32.xlu0 %v21, 2
    %v94 = vpop.permute.xlu0 %93
    %v97 = vsub.f32 %v20, %v92
    %v98 = vsub.f32 %v21, %v94
    %101 = vrot.lane.b32.xlu0 %v97, 127
    %v102 = vpop.permute.xlu0 %101
    %103 = vrot.lane.b32.xlu0 %v98, 127
    %v104 = vpop.permute.xlu0 %103
    %v107 = vmul.f32 %v97, %v102
    %v108 = vmul.f32 %v98, %v104
    %v110 = vrot.slane %v22, 6
    %v112 = vsub.f32 %v22, %v110
    %v114 = vrot.slane %v112, 1
    %v116 = vmul.f32 %v112, %v114
    %118 = vset.pattern.permute.xlu0 2
    %119 = vperm.xlu0 %118, %v107
    %v120 = vpop.permute.xlu0 %119
    %123 = vset.pattern.permute.xlu0 2
    %124 = vperm.xlu0 %123, %v108
    %v125 = vpop.permute.xlu0 %124
    %v127 = vlaneseq
    %v128 = vshrl.u32 %v127, 7
    %v129 = vsub.s32 2, %v128
    %v130 = vrot.slane %v116, %v129
    %v131 = vadd.f32 %v120, %v130
    %v132 = vadd.f32 %v125, %v130
    %v133 = vsub.f32 %v131, %v89
    %v134 = vsub.f32 %v132, %v90
    %v135 = vrcp.pop %v133
    %v136 = vrcp.pop %v134
    %v137 = vmul.f32 %v89, %v135
    %v138 = vmul.f32 %v90, %v136
    %v139 = vld [vmem:[#allocation2] sm:$0x1]
    %v140 = vmax.f32 %v137, %v138
    %v141 = vrot.slane %v140, 4
    %v142 = vmax.f32 %v140, %v141
    %v143 = vrot.slane %v142, 2
    %v144 = vmax.f32 %v142, %v143
    %v145 = vrot.slane %v144, 1
    %v146 = vmax.f32 %v144, %v145
    %v147 = vmax.f32 %v139, %v146
    %148 = vst [vmem:[#allocation2] sm:$0x1] %v147
    // Predicated region
    $region18: #{tpu_custom_call.1} parent=1 // pred_check
      %p149 = pneg %p15
    $region19: #{tpu_custom_call.1} parent=1 // pred_check_branch
      %151 = sbr.rel (%p149) target = $region21
    $region20: #{tpu_custom_call.1} parent=1 // pred_region
      %v152 = vld [vmem:[#allocation2] sm:$0x1]
      %vm153 = vcmp.ne.f32.partialorder %v152, %v152
      %v154 = vsel %vm153, 0.0, %v152
      %v155 = vmax.f32 %v154, 0.0
      %v156 = vld [vmem:[%s1] sm:$0xf]
      %v158 = vrot.slane %v156, 2
      %v160 = vadd.f32 %v156, %v158
      %v161 = vmul.f32 %v160, 0.5
      %v162 = vrot.slane %v22, 2
      %v164 = vadd.f32 %v22, %v162
      %v165 = vmul.f32 %v164, 0.5
      %v166 = vsub.f32 %v161, %v165
      %v167 = vmul.f32 %v166, %v166
      %vm168 = vcmask 1041408
      %v169 = vsel %vm168, %v167, 0.0
      %v170 = vrot.slane %v169, 4
      %v171 = vadd.f32 %v169, %v170
      %v172 = vrot.slane %v171, 2
      %v173 = vadd.f32 %v171, %v172
      %v174 = vrot.slane %v173, 1
      %v175 = vadd.f32 %v173, %v174
      %v176 = vmax.f32 %v156, %v22
      %v177 = vmin.f32 %v156, %v22
      %v179 = vrot.slane %v177, 6
      %v181 = vsub.f32 %v176, %v179
      %v182 = vmul.f32 %v181, %v181
      %v184 = vrot.slane %v182, 2
      %v186 = vsel %vm168, %v184, 0.0
      %v187 = vrot.slane %v186, 4
      %v188 = vadd.f32 %v186, %v187
      %v189 = vrot.slane %v188, 2
      %v190 = vadd.f32 %v188, %v189
      %v191 = vrot.slane %v190, 1
      %v192 = vadd.f32 %v190, %v191
      %v193 = vadd.f32 %v192, 1e-07
      %v194 = vrcp.pop %v193
      %v195 = vmul.f32 %v175, %v194
      %v196 = vsub.f32 %v155, %v195
      %v197 = vsub.f32 1.0, %v196
      %198 = vst [vmem:[#allocation3] sm:$0x1] %v197
    $region21: #{tpu_custom_call.1} parent=1 // pred_fallthru
      _
    // Predicated region
    $region22: #{tpu_custom_call.1} parent=1 // pred_check
      _
    $region23: #{tpu_custom_call.1} parent=1 // pred_check_branch
      %200 = sbr.rel (0) target = $region25
    $region24: #{tpu_custom_call.1} parent=1 // pred_region
      %s202 = ssub.s32 16, 16
      %203 = vsyncadd [#allocation4], %s202
      %s205 = sshll.u32 [#allocation3], 4
      %s206 = int_to_ptr.vmem [resolvable:$true] %s205
      %208 = dma.vmem_to_hbm [thread:$0]  %s206, 16, %s3, [#allocation4]
    $region25: #{tpu_custom_call.1} parent=1 // pred_fallthru
      _
    // Predicated region
    $region26: #{tpu_custom_call.1} parent=1 // pred_check
      _
    $region27: #{tpu_custom_call.1} parent=1 // pred_check_branch
      %210 = sbr.rel (0) target = $region29
    $region28: #{tpu_custom_call.1} parent=1 // pred_region
      %211 = dma.done [#allocation4], 16
    $region29: #{tpu_custom_call.1} parent=1 // pred_fallthru
      _
    %212 = vsyncpa [#allocation4], 1

</llo_original>
